<compile_context>
chip_gen: v5e
topology: v5e:2x2
jax: 0.10.0
libtpu: 0.0.40
codegen_flags: <defaults>
</compile_context>

<pallas_src>
import jax
import jax.numpy as jnp
from jax.experimental import pallas as pl
from jax.experimental.pallas import tpu as pltpu

_LANE = 128
_BLOCK_BYTE_BUDGET = 4 * 1024 * 1024   # ~4 MiB per block (safe on v5e / v6e / v7x)
_VMEM_LIMIT_BYTES = 32 * 1024 * 1024   # 4x block (in+out, double-buffered) fits with headroom


def _identity_kernel(x_ref, o_ref):
    # Pure pass-through: copy the current VMEM tile to the output tile.
    o_ref[...] = x_ref[...]


def _lane_dense_2d(x: jax.Array) -> jax.Array:
    """Reshape x to 2-D (rows, cols) with a lane-dense (multiple-of-128) last dim when possible."""
    if x.ndim == 0:
        return x.reshape(1, 1)
    n = x.size
    # Prefer a wide multiple-of-128 lane width -> unmasked full-vreg stores.
    for lane_w in (1024, 512, 256, 128):
        if n % lane_w == 0:
            return x.reshape(n // lane_w, lane_w)
    # Fallback: keep the original trailing dim on the lane axis.
    if x.ndim == 1:
        return x.reshape(1, -1)
    return x.reshape(-1, x.shape[-1])


def _choose_tiles(R: int, C: int, dtype_bytes: int):
    """Pick (tile_r, tile_c) so one block is ~_BLOCK_BYTE_BUDGET bytes and obeys the (8,128) rule."""
    budget = _BLOCK_BYTE_BUDGET
    # Column tiling: keep full width unless even a few rows of it exceed the budget.
    if C * dtype_bytes * min(R, 8) <= budget or C <= _LANE:
        tile_c = C
    else:
        max_c = max(_LANE, (budget // (8 * dtype_bytes)) // _LANE * _LANE)
        tile_c = min(C, max_c)            # multiple of 128 when < C
    # Row tiling: fill the byte budget; multiple of 8 when not covering all rows.
    rows_fit = max(1, budget // (tile_c * dtype_bytes))
    if rows_fit >= R:
        tile_r = R
    else:
        tile_r = max(8, (rows_fit // 8) * 8)
    return tile_r, tile_c


def identity(x: jax.Array) -> jax.Array:
    """Pallas identity: returns an array equal to x (same shape/dtype)."""
    orig_shape = x.shape
    orig_dtype = x.dtype

    if x.size == 0:
        return x

    x2 = _lane_dense_2d(x)
    R, C = x2.shape
    dtype_bytes = jnp.dtype(orig_dtype).itemsize
    tile_r, tile_c = _choose_tiles(R, C, dtype_bytes)

    grid = (pl.cdiv(R, tile_r), pl.cdiv(C, tile_c))

    out2 = pl.pallas_call(
        _identity_kernel,
        out_shape=jax.ShapeDtypeStruct((R, C), orig_dtype),
        grid_spec=pltpu.PrefetchScalarGridSpec(
            num_scalar_prefetch=0,
            grid=grid,
            in_specs=[pl.BlockSpec((tile_r, tile_c), lambda i, j: (i, j))],
            out_specs=pl.BlockSpec((tile_r, tile_c), lambda i, j: (i, j)),
        ),
        # Output aliases the input buffer: no fresh HBM allocation; with buffer
        # donation the copy collapses entirely.
        input_output_aliases={0: 0},
        compiler_params=pltpu.CompilerParams(
            dimension_semantics=("parallel", "parallel"),
            vmem_limit_bytes=_VMEM_LIMIT_BYTES,
        ),
        cost_estimate=pl.CostEstimate(
            flops=0,
            transcendentals=0,
            bytes_accessed=2 * x.size * dtype_bytes,
        ),
    )(x2)

    return out2.reshape(orig_shape)


if __name__ == "__main__":
    key = jax.random.PRNGKey(0)
    # NCHW input, small shapes: batch=2, channels=4, spatial=16x16
    x = jax.random.normal(key, (2, 4, 16, 16), dtype=jnp.float32)

    y = identity(x)
    y = jax.block_until_ready(y)

    assert y.shape == x.shape, (y.shape, x.shape)
    assert y.dtype == x.dtype, (y.dtype, x.dtype)
    assert bool(jnp.array_equal(y, x)), "identity output mismatch"

    print("KERNEL_OK")
</pallas_src>

<mosaic_0001>
module attributes {stable_mosaic.version = 11 : i64} {
  func.func @_identity_kernel(%arg0: i32, %arg1: i32, %arg2: memref<2x1024xf32, #tpu.memory_space<vmem>>, %arg3: memref<2x1024xf32, #tpu.memory_space<vmem>>) attributes {dimension_semantics = [#tpu.dimension_semantics<parallel>, #tpu.dimension_semantics<parallel>], iteration_bounds = array<i64: 1, 1>, scalar_prefetch = 0 : i64, scratch_operands = 0 : i64, tpu.core_type = #tpu.core_type<tc>, window_params = [{transform_indices = @transform_0, window_bounds = array<i64: 2, 1024>}, {transform_indices = @transform_1, window_bounds = array<i64: 2, 1024>}]} {
    %c0 = arith.constant 0 : index
    %c0_0 = arith.constant 0 : index
    %0 = vector.load %arg2[%c0, %c0_0] : memref<2x1024xf32, #tpu.memory_space<vmem>>, vector<2x1024xf32>
    %c0_1 = arith.constant 0 : index
    %c0_2 = arith.constant 0 : index
    %1 = vector.load %arg3[%c0_1, %c0_2] : memref<2x1024xf32, #tpu.memory_space<vmem>>, vector<2x1024xf32>
    tpu.vector_store %arg3[%c0_1, %c0_2], %0 {strides = array<i32>} : memref<2x1024xf32, #tpu.memory_space<vmem>>, vector<2x1024xf32>,
    return
  }
  func.func @transform_0(%arg0: i32, %arg1: i32) -> (i32, i32) {
    %c0_i32 = arith.constant 0 : i32
    return %arg0, %arg1 : i32, i32
  }
  func.func @transform_1(%arg0: i32, %arg1: i32) -> (i32, i32) {
    %c0_i32 = arith.constant 0 : i32
    return %arg0, %arg1 : i32, i32
  }
}

</mosaic_0001>

<llo_original>
// kernel: tpu_custom_call.1
$region0: #{tpu_custom_call.1}
  #allocation0 [shape = 'u32[]', space=smem, size = 0x4, offset = 0x4, fixed_abs, tag = 'smem constant byte address 0x4 - core index']
  #allocation1 [shape = 'u32[72,128]{1,0:T(1,128)}', space=vmem, size = 0x9000, scoped, tag = 'internal scratch']
  %s0 = inlined_call_operand.hbm [shape: f32[2,1024], index: 0, kind: input, shape index: {}, may-alias: {0,1}]
  %s1 = inlined_call_operand.hbm [shape: f32[2,1024], index: 1, kind: output, shape index: {}, may-alias: {0,1}]
  %s2 = sld [smem:[#allocation0]]
  $region18: #{tpu_custom_call.1} parent=0
    _
  %s4 = ssub.s32 1, %s2
  %s5 = scalar_select 0, %s4, %s2
  $region1: #{tpu_custom_call.1} parent=0
    #allocation2 [shape = 'u8[8192]{0}', space=vmem, size = 0x2000, scoped, tag = 'input window, operand 0, single buffered']
    #allocation3 [shape = 's32[1]{0}', space=sflag, size = 0x4, scoped, tag = 'scoped memory for tpu_custom_call.1']
    #allocation4 [shape = 's32[1]{0}', space=sflag, size = 0x4, scoped, tag = 'scoped memory for tpu_custom_call.1']
    #allocation5 [shape = 'u8[8192]{0}', space=vmem, size = 0x2000, scoped, tag = 'output window, operand 0, single buffered']
    %6 = vsyncpa [#allocation3], 0
    %7 = vsyncpa [#allocation4], 0
    // Predicated region
    $region2: #{tpu_custom_call.1} parent=1 // pred_check
      _
    $region3: #{tpu_custom_call.1} parent=1 // pred_check_branch
      %9 = sbr.rel (0) target = $region5
    $region4: #{tpu_custom_call.1} parent=1 // pred_region
      %11 = vsyncadd [#allocation3], 0
      %s13 = sshll.u32 %s0, 4
      %s14 = int_to_ptr.hbm [resolvable:$true] %s13
      %s15 = sshll.u32 [#allocation2], 4
      %s16 = int_to_ptr.vmem [resolvable:$true] %s15
      %18 = dma.hbm_to_vmem [thread:$0]  %s14, 256, %s16, [#allocation3]
    $region5: #{tpu_custom_call.1} parent=1 // pred_fallthru
      _
    // Predicated region
    $region6: #{tpu_custom_call.1} parent=1 // pred_check
      _
    $region7: #{tpu_custom_call.1} parent=1 // pred_check_branch
      %20 = sbr.rel (0) target = $region9
    $region8: #{tpu_custom_call.1} parent=1 // pred_region
      %22 = dma.done [#allocation3], 256
    $region9: #{tpu_custom_call.1} parent=1 // pred_fallthru
      _
    %v23 = vld [vmem:[#allocation2] sm:$0xff]
    %v24 = vld [vmem:[#allocation2 + $0x8] sm:$0xff]
    %25 = vst [vmem:[#allocation5] sm:$0xff] %v23
    %26 = vst [vmem:[#allocation5 + $0x8] sm:$0xff] %v24
    // Predicated region
    $region10: #{tpu_custom_call.1} parent=1 // pred_check
      _
    $region11: #{tpu_custom_call.1} parent=1 // pred_check_branch
      %28 = sbr.rel (0) target = $region13
    $region12: #{tpu_custom_call.1} parent=1 // pred_region
      %30 = vsyncadd [#allocation4], 0
      %s32 = sshll.u32 [#allocation5], 4
      %s33 = int_to_ptr.vmem [resolvable:$true] %s32
      %s34 = sshll.u32 %s1, 4
      %s35 = int_to_ptr.hbm [resolvable:$true] %s34
      %37 = dma.vmem_to_hbm [thread:$0]  %s33, 256, %s35, [#allocation4]
    $region13: #{tpu_custom_call.1} parent=1 // pred_fallthru
      _
    // Predicated region
    $region14: #{tpu_custom_call.1} parent=1 // pred_check
      _
    $region15: #{tpu_custom_call.1} parent=1 // pred_check_branch
      %39 = sbr.rel (0) target = $region17
    $region16: #{tpu_custom_call.1} parent=1 // pred_region
      %41 = dma.done [#allocation4], 256
    $region17: #{tpu_custom_call.1} parent=1 // pred_fallthru
      _
    %42 = vsyncpa [#allocation3], 1
    %43 = vsyncpa [#allocation4], 1

</llo_original>
